<compile_context>
chip_gen: v7x
topology: tpu7x:2x2x1
jax: 0.10.0
libtpu: 0.0.40
codegen_flags: <defaults>
</compile_context>

<pallas_src>
import jax
import jax.numpy as jnp
from jax.experimental import pallas as pl
from jax.experimental.pallas import tpu as pltpu

LANE = 128  # vreg lane width


def lr_kernel(w_ref, b_ref, x_ref, o_ref):
    # w_ref: SMEM (F,) f32, b_ref: SMEM (1,) f32
    # x_ref: VMEM (F, tile_rows, 128) f32, o_ref: VMEM (tile_rows, 128) f32
    F = x_ref.shape[0]
    # VPU multiply-add over the (static, tiny) feature dim — no MXU round-trip.
    z = x_ref[0] * w_ref[0]
    for f in range(1, F):
        z = z + x_ref[f] * w_ref[f]
    z = z + b_ref[0]
    # sigmoid: exp goes to the EUP; exact reciprocal keeps 1e-6 parity with the
    # JAX reference (pl.reciprocal(..., approx=True) would ride the EUP slot
    # but loosen accuracy; this kernel is memory-bound so it wouldn't help).
    e = jnp.exp(-z)
    o_ref[...] = pl.reciprocal(1.0 + e, approx=False).astype(o_ref.dtype)


def lr_forward(x, weight, bias, *, tile_rows=1024):
    """x: (N, F) f32, weight: (1, F) f32 (torch layout), bias: (1,) f32 -> (N, 1) f32."""
    N, F = x.shape
    assert weight.shape == (1, F) and bias.shape == (1,)

    rows = pl.cdiv(N, LANE)                       # number of 128-wide batch rows
    tr = rows if rows <= tile_rows else tile_rows  # tile_rows is a multiple of 8
    num_tiles = pl.cdiv(rows, tr)
    rows_padded = num_tiles * tr
    n_padded = rows_padded * LANE

    # Lane-dense packing: one dense (rows, 128) slab per feature, batch on lanes.
    xt = jnp.zeros((F, n_padded), x.dtype).at[:, :N].set(x.T)
    xt = xt.reshape(F, rows_padded, LANE)

    out_padded = pl.pallas_call(
        lr_kernel,
        out_shape=jax.ShapeDtypeStruct((rows_padded, LANE), jnp.float32),
        grid_spec=pl.GridSpec(
            grid=(num_tiles,),
            in_specs=[
                pl.BlockSpec(memory_space=pltpu.MemorySpace.SMEM),  # weight (F,)
                pl.BlockSpec(memory_space=pltpu.MemorySpace.SMEM),  # bias (1,)
                pl.BlockSpec((F, tr, LANE), lambda i: (0, i, 0)),   # x tile
            ],
            out_specs=pl.BlockSpec((tr, LANE), lambda i: (i, 0)),
        ),
        compiler_params=pltpu.CompilerParams(
            dimension_semantics=("parallel",),  # megacore sharding on v7x
        ),
    )(weight.reshape(F), bias, xt)

    # Undo the lane-dense packing; row-major flatten preserves batch order.
    return out_padded.reshape(-1)[:N].reshape(N, 1)


if __name__ == "__main__":
    key = jax.random.PRNGKey(0)
    kx, kw, kb, kx2 = jax.random.split(key, 4)

    F = 2  # nn.Linear(2, 1)

    # Deterministic "PyTorch-like" init: U(-1/sqrt(F), 1/sqrt(F))
    bound = 1.0 / jnp.sqrt(jnp.float32(F))
    weight = jax.random.uniform(kw, (1, F), jnp.float32, -bound, bound)
    bias = jax.random.uniform(kb, (1,), jnp.float32, -bound, bound)

    # Small batch, matching the module's forward contract.
    x = jax.random.normal(kx, (8, F), jnp.float32)
    out = jax.block_until_ready(lr_forward(x, weight, bias))
    ref = jax.nn.sigmoid(x @ weight.T + bias)
    assert out.shape == (8, 1)
    assert jnp.allclose(out, ref, atol=1e-6), "mismatch vs reference (N=8)"

    # A non-multiple-of-128 batch to exercise the lane packing / padding path.
    x2 = jax.random.normal(kx2, (1000, F), jnp.float32)
    out2 = jax.block_until_ready(lr_forward(x2, weight, bias))
    ref2 = jax.nn.sigmoid(x2 @ weight.T + bias)
    assert out2.shape == (1000, 1)
    assert jnp.allclose(out2, ref2, atol=1e-6), "mismatch vs reference (N=1000)"

    print("KERNEL_OK")
</pallas_src>

<mosaic_0001>
module attributes {stable_mosaic.version = 11 : i64} {
  func.func @lr_kernel(%arg0: i32, %arg1: memref<2xf32, #tpu.memory_space<smem>>, %arg2: memref<1xf32, #tpu.memory_space<smem>>, %arg3: memref<2x1x128xf32, #tpu.memory_space<vmem>>, %arg4: memref<1x128xf32, #tpu.memory_space<vmem>>) attributes {dimension_semantics = [#tpu.dimension_semantics<parallel>], iteration_bounds = array<i64: 1>, scalar_prefetch = 0 : i64, scratch_operands = 0 : i64, tpu.core_type = #tpu.core_type<tc>, window_params = [{transform_indices = @transform_0, window_bounds = array<i64: 2>}, {transform_indices = @transform_1, window_bounds = array<i64: 1>}, {transform_indices = @transform_2, window_bounds = array<i64: 2, 1, 128>}, {transform_indices = @transform_3, window_bounds = array<i64: 1, 128>}]} {
    %c0 = arith.constant 0 : index
    %c0_0 = arith.constant 0 : index
    %c0_1 = arith.constant 0 : index
    %0 = vector.load %arg3[%c0, %c0_0, %c0_1] : memref<2x1x128xf32, #tpu.memory_space<vmem>>, vector<1x1x128xf32>
    %1 = vector.shape_cast %0 : vector<1x1x128xf32> to vector<1x128xf32>
    %c0_2 = arith.constant 0 : index
    %2 = memref.load %arg1[%c0_2] : memref<2xf32, #tpu.memory_space<smem>>
    %3 = vector.broadcast %2 : f32 to vector<1x128xf32>
    %4 = arith.mulf %1, %3 : vector<1x128xf32>
    %c1 = arith.constant 1 : index
    %c0_3 = arith.constant 0 : index
    %c0_4 = arith.constant 0 : index
    %5 = vector.load %arg3[%c1, %c0_3, %c0_4] : memref<2x1x128xf32, #tpu.memory_space<vmem>>, vector<1x1x128xf32>
    %6 = vector.shape_cast %5 : vector<1x1x128xf32> to vector<1x128xf32>
    %c1_5 = arith.constant 1 : index
    %7 = memref.load %arg1[%c1_5] : memref<2xf32, #tpu.memory_space<smem>>
    %8 = vector.broadcast %7 : f32 to vector<1x128xf32>
    %9 = arith.mulf %6, %8 : vector<1x128xf32>
    %10 = arith.addf %4, %9 : vector<1x128xf32>
    %c0_6 = arith.constant 0 : index
    %11 = memref.load %arg2[%c0_6] : memref<1xf32, #tpu.memory_space<smem>>
    %12 = vector.broadcast %11 : f32 to vector<1x128xf32>
    %13 = arith.addf %10, %12 : vector<1x128xf32>
    %cst = arith.constant 0.000000e+00 : f32
    %14 = vector.broadcast %cst : f32 to vector<1x128xf32>
    %15 = arith.subf %14, %13 : vector<1x128xf32>
    %16 = math.exp %15 : vector<1x128xf32>
    %cst_7 = arith.constant 1.000000e+00 : f32
    %17 = vector.broadcast %cst_7 : f32 to vector<1x128xf32>
    %18 = arith.addf %17, %16 : vector<1x128xf32>
    %19 = tpu.reciprocal %18 : vector<1x128xf32> -> vector<1x128xf32>
    %c0_8 = arith.constant 0 : index
    %c0_9 = arith.constant 0 : index
    %20 = vector.load %arg4[%c0_8, %c0_9] : memref<1x128xf32, #tpu.memory_space<vmem>>, vector<1x128xf32>
    tpu.vector_store %arg4[%c0_8, %c0_9], %19 {strides = array<i32>} : memref<1x128xf32, #tpu.memory_space<vmem>>, vector<1x128xf32>,
    return
  }
  func.func @transform_0(%arg0: i32) -> i32 {
    %c0_i32 = arith.constant 0 : i32
    %c0_i32_0 = arith.constant 0 : i32
    return %c0_i32 : i32
  }
  func.func @transform_1(%arg0: i32) -> i32 {
    %c0_i32 = arith.constant 0 : i32
    %c0_i32_0 = arith.constant 0 : i32
    return %c0_i32 : i32
  }
  func.func @transform_2(%arg0: i32) -> (i32, i32, i32) {
    %c0_i32 = arith.constant 0 : i32
    %c0_i32_0 = arith.constant 0 : i32
    %c0_i32_1 = arith.constant 0 : i32
    return %c0_i32, %arg0, %c0_i32_0 : i32, i32, i32
  }
  func.func @transform_3(%arg0: i32) -> (i32, i32) {
    %c0_i32 = arith.constant 0 : i32
    %c0_i32_0 = arith.constant 0 : i32
    return %arg0, %c0_i32 : i32, i32
  }
}

</mosaic_0001>

<llo_original>
// kernel: tpu_custom_call.1
$region0: #{tpu_custom_call.1}
  #allocation0 [shape = 'u32[]', space=smem, size = 0x4, offset = 0x4, fixed_abs, tag = 'smem constant byte address 0x4 - core index']
  #allocation1 [shape = 'u32[144,128]{1,0:T(1,128)}', space=vmem, size = 0x12000, scoped, tag = 'internal scratch']
  #allocation2 [shape = 'f32[1]{0:T(128)S(6)}', space=smem, size = 0x200, scoped, tag = 'scoped memory for tpu_custom_call.1']
  %s0 = inlined_call_operand.vmem [shape: f32[2], index: 0, kind: input, shape index: {}]
  %s1 = inlined_call_operand.<no memory space> [shape: f32[1], index: 1, kind: input, shape index: {}]
  %s2 = inlined_call_operand.vmem [shape: f32[2,1,128], index: 2, kind: input, shape index: {}]
  %s3 = inlined_call_operand.hbm [shape: f32[1,128], index: 3, kind: output, shape index: {}]
  %s4 = sld [smem:[#allocation0]]
  $region26: #{tpu_custom_call.1} parent=0
    _
  %s6 = ssub.s32 1, %s4
  %s7 = scalar_select 0, %s6, %s4
  %8 = sst [smem:[#allocation2]] %s1
  $region1: #{tpu_custom_call.1} parent=0
    #allocation3 [shape = 'u8[512]{0}', space=smem, size = 0x200, scoped, tag = 'input window, operand 0, single buffered']
    #allocation4 [shape = 's32[1]{0}', space=sflag, size = 0x4, scoped, tag = 'scoped memory for tpu_custom_call.1']
    #allocation5 [shape = 's32[1]{0}', space=sflag, size = 0x4, scoped, tag = 'scoped memory for tpu_custom_call.1']
    #allocation6 [shape = 'u8[512]{0}', space=vmem, size = 0x400, scoped, tag = 'output window, operand 0, single buffered']
    %9 = vsyncpa [#allocation5], 0
    %10 = vsyncpa [#allocation4], 0
    // Predicated region
    $region2: #{tpu_custom_call.1} parent=1 // pred_check
      _
    $region3: #{tpu_custom_call.1} parent=1 // pred_check_branch
      %12 = sbr.rel (0) target = $region5
    $region4: #{tpu_custom_call.1} parent=1 // pred_region
      %s14 = ssub.s32 16, 16
      %15 = vsyncadd [#allocation5], %s14
      %s17 = sshll.u32 %s0, 4
      %s18 = int_to_ptr.vmem [resolvable:$true] %s17
      %20 = dma.vmem_to_smem %s18, 16, [#allocation3], [#allocation5]
    $region5: #{tpu_custom_call.1} parent=1 // pred_fallthru
      _
    // Predicated region
    $region6: #{tpu_custom_call.1} parent=1 // pred_check
      _
    $region7: #{tpu_custom_call.1} parent=1 // pred_check_branch
      %22 = sbr.rel (0) target = $region9
    $region8: #{tpu_custom_call.1} parent=1 // pred_region
      _
    $region9: #{tpu_custom_call.1} parent=1 // pred_fallthru
      _
    // Predicated region
    $region10: #{tpu_custom_call.1} parent=1 // pred_check
      _
    $region11: #{tpu_custom_call.1} parent=1 // pred_check_branch
      %24 = sbr.rel (0) target = $region13
    $region12: #{tpu_custom_call.1} parent=1 // pred_region
      _
    $region13: #{tpu_custom_call.1} parent=1 // pred_fallthru
      _
    // Predicated region
    $region14: #{tpu_custom_call.1} parent=1 // pred_check
      _
    $region15: #{tpu_custom_call.1} parent=1 // pred_check_branch
      %26 = sbr.rel (0) target = $region17
    $region16: #{tpu_custom_call.1} parent=1 // pred_region
      %27 = dma.done [#allocation5], 16
    $region17: #{tpu_custom_call.1} parent=1 // pred_fallthru
      _
    %28 = sfence
    %v29 = vld [vmem:[%s2] sm:$0x1]
    %s30 = sld [smem:[#allocation3]]
    %v31 = vstv %s30
    %v32 = vmul.f32 %v29, %v31
    %s33 = scalar_lea.vmem %s2, 1
    %v34 = vld [vmem:[%s33] sm:$0x1]
    %s35 = sld [smem:[#allocation3 + $0x1]]
    %v36 = vstv %s35
    %v37 = vmul.f32 %v34, %v36
    %v38 = vadd.f32 %v32, %v37
    %s39 = sld [smem:[#allocation2]]
    %v40 = vstv %s39
    %v41 = vadd.f32 %v38, %v40
    %v42 = vsub.f32 0.0, %v41
    %v43 = vmul.f32 %v42, 1.442695
    %v44 = vpow.pop %v43
    %v45 = vadd.f32 %v44, 1.0
    %v46 = vrcp.pop %v45
    %47 = vst [vmem:[#allocation6] sm:$0x1] %v46
    // Predicated region
    $region18: #{tpu_custom_call.1} parent=1 // pred_check
      _
    $region19: #{tpu_custom_call.1} parent=1 // pred_check_branch
      %49 = sbr.rel (0) target = $region21
    $region20: #{tpu_custom_call.1} parent=1 // pred_region
      %s51 = ssub.s32 16, 16
      %52 = vsyncadd [#allocation4], %s51
      %s54 = sshll.u32 [#allocation6], 4
      %s55 = int_to_ptr.vmem [resolvable:$true] %s54
      %57 = dma.vmem_to_hbm [thread:$0]  %s55, 16, %s3, [#allocation4]
    $region21: #{tpu_custom_call.1} parent=1 // pred_fallthru
      _
    // Predicated region
    $region22: #{tpu_custom_call.1} parent=1 // pred_check
      _
    $region23: #{tpu_custom_call.1} parent=1 // pred_check_branch
      %59 = sbr.rel (0) target = $region25
    $region24: #{tpu_custom_call.1} parent=1 // pred_region
      %60 = dma.done [#allocation4], 16
    $region25: #{tpu_custom_call.1} parent=1 // pred_fallthru
      _
    %61 = vsyncpa [#allocation4], 1
    %62 = vsyncpa [#allocation5], 1

</llo_original>
